<compile_context>
chip_gen: v7x
topology: tpu7x:2x2x1
jax: 0.10.0
libtpu: 0.0.40
codegen_flags: <defaults>
</compile_context>

<pallas_src>
import jax
import jax.numpy as jnp
from jax.experimental import pallas as pl
from jax.experimental.pallas import tpu as pltpu


def _patch_merge_kernel(x_ref, w_ref, bw_ref, o_ref):
    # x_ref:  (TG, s1, W_, Cp)  -- Cp = s2 * in_dim, native dtype
    # w_ref:  (D, P)            -- gamma-folded projection, matmul dtype
    # bw_ref: (1, P)  float32   -- beta @ W^T
    # o_ref:  (TG, W_, P)
    x = x_ref[...]
    s1 = x.shape[1]

    # Fused pixel-unshuffle: concatenate the s1 row-slices along channels
    # (done on the native-dtype tile -> minimal copy bytes).
    y3 = jnp.concatenate([x[:, j] for j in range(s1)], axis=-1)  # (TG, W_, D)
    tg, wd, d = y3.shape
    y = y3.reshape(tg * wd, d).astype(jnp.float32)               # (TG*W_, D)

    # LayerNorm statistics over the last dim (PyTorch: biased variance, eps=1e-5).
    mean = jnp.mean(y, axis=-1, keepdims=True)
    c = y - mean
    var = jnp.mean(c * c, axis=-1, keepdims=True)
    zn = (c * jax.lax.rsqrt(var + 1e-5)).astype(w_ref.dtype)     # affine folded into w

    # Projection on the MXU, f32 accumulation; beta contribution in the epilogue.
    out = jnp.dot(zn, w_ref[...], preferred_element_type=jnp.float32) + bw_ref[...]
    o_ref[...] = out.reshape(tg, wd, -1).astype(o_ref.dtype)


def patch_merge(x, H, gamma, beta, weight, scale_factor=(2, 1)):
    """x: (B, H*W, in_dim); gamma/beta: (s1*s2*in_dim,);
    weight: (out_dim, s1*s2*in_dim) in PyTorch layout."""
    B, L, C = x.shape
    W = L // H
    s1, s2 = scale_factor

    # b (h w) c -> b h w c   (free reshape)
    xg = x.reshape(B, H, W, C)

    # zero-pad H to even (matches F.pad(..., (0,0,0,0,0,H%2)))
    if H % 2 == 1:
        xg = jnp.pad(xg, ((0, 0), (0, 1), (0, 0), (0, 0)))
        H = H + 1

    H_, W_ = H // s1, W // s2
    Cp = s2 * C            # merging (s2, C) along the last dim is contiguous/free
    D = s1 * Cp
    BH = B * H_

    # Free, contiguous reshape: groups of s1 consecutive H-rows stay together.
    xr = xg.reshape(BH, s1, W_, Cp)

    out_dim = weight.shape[0]

    # bf16 operands on the MXU when inputs/weights are bf16; f32 accumulation.
    mm_dtype = (jnp.bfloat16
                if (x.dtype == jnp.bfloat16 or weight.dtype == jnp.bfloat16)
                else jnp.float32)

    # Fold the LN affine into the projection (tiny one-time (D, out_dim) work):
    #   (xn*gamma + beta) @ W^T = xn @ (gamma[:,None]*W^T) + beta @ W^T
    w_t = weight.T.astype(jnp.float32)                              # (D, out_dim)
    w_scaled = (gamma.astype(jnp.float32)[:, None] * w_t).astype(mm_dtype)
    beta_w = (beta.astype(jnp.float32) @ w_t).reshape(1, out_dim)   # (1, out_dim) f32

    # ---- Tile the group (B*H_) axis: large tiles, bounded VMEM footprint ----
    x_isz = jnp.dtype(x.dtype).itemsize
    o_isz = jnp.dtype(x.dtype).itemsize
    target_rows = 1024                                  # >=512 rows per step
    TG = max(1, target_rows // max(W_, 1))
    # double-buffered x/out tiles + rough f32 working set + accumulator
    bytes_per_group = (2 * s1 * W_ * Cp * x_isz
                       + 2 * W_ * out_dim * o_isz
                       + 4 * W_ * D * 4
                       + W_ * out_dim * 4)
    vmem_budget = 8 * 1024 * 1024                       # well under v7x's 64 MiB
    TG = max(1, min(TG, vmem_budget // max(bytes_per_group, 1)))
    TG = min(TG, BH)
    grid = (pl.cdiv(BH, TG),)

    N = BH * W_
    cost = pl.CostEstimate(
        flops=2 * N * D * out_dim,
        transcendentals=N,
        bytes_accessed=(N * D * x_isz
                        + D * out_dim * jnp.dtype(mm_dtype).itemsize
                        + N * out_dim * o_isz),
    )

    out3 = pl.pallas_call(
        _patch_merge_kernel,
        out_shape=jax.ShapeDtypeStruct((BH, W_, out_dim), x.dtype),
        grid_spec=pltpu.PrefetchScalarGridSpec(
            num_scalar_prefetch=0,
            grid=grid,
            in_specs=[
                # activation tile, pipelined (double-buffered) along the group axis
                pl.BlockSpec((TG, s1, W_, Cp), lambda g: (g, 0, 0, 0)),
                # gamma-folded weight + beta@W^T stay VMEM-resident across steps
                pl.BlockSpec((D, out_dim), lambda g: (0, 0)),
                pl.BlockSpec((1, out_dim), lambda g: (0, 0)),
            ],
            out_specs=pl.BlockSpec((TG, W_, out_dim), lambda g: (g, 0, 0)),
        ),
        compiler_params=pltpu.CompilerParams(
            dimension_semantics=("parallel",),     # row-parallel -> megacore
            vmem_limit_bytes=32 * 1024 * 1024,
        ),
        cost_estimate=cost,
    )(xr, w_scaled, beta_w)

    return out3.reshape(B, H_ * W_, out_dim)


def _reference(x, H, gamma, beta, weight, scale_factor=(2, 1)):
    """Pure-JAX reference of the PyTorch forward."""
    B, L, C = x.shape
    W = L // H
    s1, s2 = scale_factor
    xg = x.reshape(B, H, W, C)
    if H % 2 == 1:
        xg = jnp.pad(xg, ((0, 0), (0, 1), (0, 0), (0, 0)))
        H = H + 1
    H_, W_ = H // s1, W // s2
    xu = xg.reshape(B, H_, s1, W_, s2, C)
    xu = jnp.transpose(xu, (0, 1, 3, 2, 4, 5)).reshape(B, H_ * W_, s1 * s2 * C)
    mean = jnp.mean(xu, axis=-1, keepdims=True)
    var = jnp.mean((xu - mean) ** 2, axis=-1, keepdims=True)
    xn = (xu - mean) / jnp.sqrt(var + 1e-5)
    y = xn * gamma + beta
    return y @ weight.T


if __name__ == "__main__":
    # Small shapes consistent with the module: B=2, in_dim=4, H=8, W=16 -> L=128
    B, in_dim, H, W = 2, 4, 8, 16
    out_dim = 8
    s1, s2 = 2, 1
    D = s1 * s2 * in_dim

    key = jax.random.PRNGKey(0)
    kx, kg, kb, kw = jax.random.split(key, 4)
    x = jax.random.normal(kx, (B, H * W, in_dim), dtype=jnp.float32)
    gamma = 1.0 + 0.1 * jax.random.normal(kg, (D,), dtype=jnp.float32)
    beta = 0.1 * jax.random.normal(kb, (D,), dtype=jnp.float32)
    weight = 0.1 * jax.random.normal(kw, (out_dim, D), dtype=jnp.float32)

    out = patch_merge(x, H, gamma, beta, weight, (s1, s2))
    out = jax.block_until_ready(out)
    ref = _reference(x, H, gamma, beta, weight, (s1, s2))
    assert out.shape == (B, H * W // 2, out_dim), out.shape
    err = float(jnp.max(jnp.abs(out - ref)))
    assert err < 1e-4, err

    # Exercise the odd-H zero-padding branch as well.
    H2, W2 = 5, 8
    x2 = jax.random.normal(kx, (B, H2 * W2, in_dim), dtype=jnp.float32)
    out2 = jax.block_until_ready(patch_merge(x2, H2, gamma, beta, weight, (s1, s2)))
    ref2 = _reference(x2, H2, gamma, beta, weight, (s1, s2))
    assert out2.shape == ref2.shape, (out2.shape, ref2.shape)
    err2 = float(jnp.max(jnp.abs(out2 - ref2)))
    assert err2 < 1e-4, err2

    print("KERNEL_OK")
</pallas_src>

<mosaic_0001>
module attributes {stable_mosaic.version = 11 : i64} {
  func.func @_patch_merge_kernel(%arg0: i32, %arg1: memref<8x2x16x4xf32, #tpu.memory_space<vmem>>, %arg2: memref<8x8xf32, #tpu.memory_space<vmem>>, %arg3: memref<1x8xf32, #tpu.memory_space<vmem>>, %arg4: memref<8x16x8xf32, #tpu.memory_space<vmem>>) attributes {dimension_semantics = [#tpu.dimension_semantics<parallel>], iteration_bounds = array<i64: 1>, scalar_prefetch = 0 : i64, scratch_operands = 0 : i64, tpu.core_type = #tpu.core_type<tc>, window_params = [{transform_indices = @transform_0, window_bounds = array<i64: 8, 2, 16, 4>}, {pipeline_mode = #tpu.pipeline_mode<synchronous>, transform_indices = @transform_1, window_bounds = array<i64: 8, 8>}, {pipeline_mode = #tpu.pipeline_mode<synchronous>, transform_indices = @transform_2, window_bounds = array<i64: 1, 8>}, {transform_indices = @transform_3, window_bounds = array<i64: 8, 16, 8>}]} {
    %c0 = arith.constant 0 : index
    %c0_0 = arith.constant 0 : index
    %c0_1 = arith.constant 0 : index
    %c0_2 = arith.constant 0 : index
    %0 = vector.load %arg1[%c0, %c0_0, %c0_1, %c0_2] : memref<8x2x16x4xf32, #tpu.memory_space<vmem>>, vector<8x2x16x4xf32>
    %1 = vector.extract_strided_slice %0 {offsets = [0, 0, 0, 0], sizes = [8, 1, 16, 4], strides = [1, 1, 1, 1]} : vector<8x2x16x4xf32> to vector<8x1x16x4xf32>
    %2 = vector.shape_cast %1 : vector<8x1x16x4xf32> to vector<8x16x4xf32>
    %3 = vector.extract_strided_slice %0 {offsets = [0, 1, 0, 0], sizes = [8, 1, 16, 4], strides = [1, 1, 1, 1]} : vector<8x2x16x4xf32> to vector<8x1x16x4xf32>
    %4 = vector.shape_cast %3 : vector<8x1x16x4xf32> to vector<8x16x4xf32>
    %5 = tpu.concatenate %2, %4 in 2 : vector<8x16x4xf32>, vector<8x16x4xf32> -> vector<8x16x8xf32>
    %6 = vector.shape_cast %5 : vector<8x16x8xf32> to vector<128x8xf32>
    %cst = arith.constant dense<0.000000e+00> : vector<128xf32>
    %7 = vector.multi_reduction <add>, %6, %cst [1] : vector<128x8xf32> to vector<128xf32>
    %8 = vector.shape_cast %7 : vector<128xf32> to vector<128x1xf32>
    %cst_3 = arith.constant 8.000000e+00 : f32
    %9 = vector.broadcast %cst_3 : f32 to vector<128x1xf32>
    %10 = arith.divf %8, %9 : vector<128x1xf32>
    %11 = vector.broadcast %10 : vector<128x1xf32> to vector<128x8xf32>
    %12 = arith.subf %6, %11 : vector<128x8xf32>
    %13 = arith.mulf %12, %12 : vector<128x8xf32>
    %cst_4 = arith.constant dense<0.000000e+00> : vector<128xf32>
    %14 = vector.multi_reduction <add>, %13, %cst_4 [1] : vector<128x8xf32> to vector<128xf32>
    %15 = vector.shape_cast %14 : vector<128xf32> to vector<128x1xf32>
    %cst_5 = arith.constant 8.000000e+00 : f32
    %16 = vector.broadcast %cst_5 : f32 to vector<128x1xf32>
    %17 = arith.divf %15, %16 : vector<128x1xf32>
    %cst_6 = arith.constant 9.99999974E-6 : f32
    %18 = vector.broadcast %cst_6 : f32 to vector<128x1xf32>
    %19 = arith.addf %17, %18 : vector<128x1xf32>
    %20 = math.rsqrt %19 : vector<128x1xf32>
    %21 = vector.broadcast %20 : vector<128x1xf32> to vector<128x8xf32>
    %22 = arith.mulf %12, %21 : vector<128x8xf32>
    %c0_7 = arith.constant 0 : index
    %c0_8 = arith.constant 0 : index
    %23 = vector.load %arg2[%c0_7, %c0_8] : memref<8x8xf32, #tpu.memory_space<vmem>>, vector<8x8xf32>
    %cst_9 = arith.constant dense<0.000000e+00> : vector<128x8xf32>
    %24 = tpu.matmul %22, %23, %cst_9 {dimension_numbers = #tpu.dot_dimension_numbers<[1], [0], [0], [1], [0, 0, 1, 1], [], []>} : vector<128x8xf32>, vector<8x8xf32>, vector<128x8xf32> -> vector<128x8xf32>
    %c0_10 = arith.constant 0 : index
    %c0_11 = arith.constant 0 : index
    %25 = vector.load %arg3[%c0_10, %c0_11] : memref<1x8xf32, #tpu.memory_space<vmem>>, vector<1x8xf32>
    %26 = vector.broadcast %25 : vector<1x8xf32> to vector<128x8xf32>
    %27 = arith.addf %24, %26 : vector<128x8xf32>
    %28 = vector.shape_cast %27 : vector<128x8xf32> to vector<8x16x8xf32>
    %c0_12 = arith.constant 0 : index
    %c0_13 = arith.constant 0 : index
    %c0_14 = arith.constant 0 : index
    %29 = vector.load %arg4[%c0_12, %c0_13, %c0_14] : memref<8x16x8xf32, #tpu.memory_space<vmem>>, vector<8x16x8xf32>
    tpu.vector_store %arg4[%c0_12, %c0_13, %c0_14], %28 {strides = array<i32>} : memref<8x16x8xf32, #tpu.memory_space<vmem>>, vector<8x16x8xf32>,
    return
  }
  func.func @transform_0(%arg0: i32) -> (i32, i32, i32, i32) {
    %c0_i32 = arith.constant 0 : i32
    %c0_i32_0 = arith.constant 0 : i32
    %c0_i32_1 = arith.constant 0 : i32
    %c0_i32_2 = arith.constant 0 : i32
    return %arg0, %c0_i32, %c0_i32_0, %c0_i32_1 : i32, i32, i32, i32
  }
  func.func @transform_1(%arg0: i32) -> (i32, i32) {
    %c0_i32 = arith.constant 0 : i32
    %c0_i32_0 = arith.constant 0 : i32
    %c0_i32_1 = arith.constant 0 : i32
    return %c0_i32, %c0_i32_0 : i32, i32
  }
  func.func @transform_2(%arg0: i32) -> (i32, i32) {
    %c0_i32 = arith.constant 0 : i32
    %c0_i32_0 = arith.constant 0 : i32
    %c0_i32_1 = arith.constant 0 : i32
    return %c0_i32, %c0_i32_0 : i32, i32
  }
  func.func @transform_3(%arg0: i32) -> (i32, i32, i32) {
    %c0_i32 = arith.constant 0 : i32
    %c0_i32_0 = arith.constant 0 : i32
    %c0_i32_1 = arith.constant 0 : i32
    return %arg0, %c0_i32, %c0_i32_0 : i32, i32, i32
  }
}

</mosaic_0001>

<llo_original>
// kernel: tpu_custom_call.1
$region0: #{tpu_custom_call.1}
  #allocation0 [shape = 'u32[]', space=smem, size = 0x4, offset = 0x4, fixed_abs, tag = 'smem constant byte address 0x4 - core index']
  #allocation1 [shape = 'u32[144,128]{1,0:T(1,128)}', space=vmem, size = 0x12000, scoped, tag = 'internal scratch']
  %s0 = inlined_call_operand.vmem [shape: f32[8,2,16,4], index: 0, kind: input, shape index: {}]
  %s1 = inlined_call_operand.vmem [shape: f32[8,8], index: 1, kind: input, shape index: {}]
  %s2 = inlined_call_operand.vmem [shape: f32[1,8], index: 2, kind: input, shape index: {}]
  %s3 = inlined_call_operand.vmem [shape: f32[8,16,8], index: 3, kind: output, shape index: {}]
  %s4 = sld [smem:[#allocation0]]
  $region22: #{tpu_custom_call.1} parent=0
    _
  %s6 = ssub.s32 1, %s4
  %s7 = scalar_select 0, %s6, %s4
  // Predicated region
  $region2: #{tpu_custom_call.1} parent=0 // pred_check
    _
  $region3: #{tpu_custom_call.1} parent=0 // pred_check_branch
    %9 = sbr.rel (0) target = $region5
  $region4: #{tpu_custom_call.1} parent=0 // pred_region
    _
  $region5: #{tpu_custom_call.1} parent=0 // pred_fallthru
    _
  // Predicated region
  $region6: #{tpu_custom_call.1} parent=0 // pred_check
    _
  $region7: #{tpu_custom_call.1} parent=0 // pred_check_branch
    %11 = sbr.rel (0) target = $region9
  $region8: #{tpu_custom_call.1} parent=0 // pred_region
    _
  $region9: #{tpu_custom_call.1} parent=0 // pred_fallthru
    _
  // Predicated region
  $region10: #{tpu_custom_call.1} parent=0 // pred_check
    _
  $region11: #{tpu_custom_call.1} parent=0 // pred_check_branch
    %13 = sbr.rel (0) target = $region13
  $region12: #{tpu_custom_call.1} parent=0 // pred_region
    _
  $region13: #{tpu_custom_call.1} parent=0 // pred_fallthru
    _
  %v14 = vld [vmem:[%s0] sm:$0xff]
  %v15 = vld [vmem:[%s0 + $0x8] sm:$0xff]
  %v16 = vld [vmem:[%s0 + $0x10] sm:$0xff]
  %v17 = vld [vmem:[%s0 + $0x18] sm:$0xff]
  %v18 = vld [vmem:[%s0 + $0x20] sm:$0xff]
  %v19 = vld [vmem:[%s0 + $0x28] sm:$0xff]
  %v20 = vld [vmem:[%s0 + $0x30] sm:$0xff]
  %v21 = vld [vmem:[%s0 + $0x38] sm:$0xff]
  %v22 = vld [vmem:[%s0 + $0x40] sm:$0xff]
  %v23 = vld [vmem:[%s0 + $0x48] sm:$0xff]
  %v24 = vld [vmem:[%s0 + $0x50] sm:$0xff]
  %v25 = vld [vmem:[%s0 + $0x58] sm:$0xff]
  %v26 = vld [vmem:[%s0 + $0x60] sm:$0xff]
  %v27 = vld [vmem:[%s0 + $0x68] sm:$0xff]
  %v28 = vld [vmem:[%s0 + $0x70] sm:$0xff]
  %v29 = vld [vmem:[%s0 + $0x78] sm:$0xff]
  %v30 = vld [vmem:[%s0 + $0x80] sm:$0xff]
  %v31 = vld [vmem:[%s0 + $0x88] sm:$0xff]
  %v32 = vld [vmem:[%s0 + $0x90] sm:$0xff]
  %v33 = vld [vmem:[%s0 + $0x98] sm:$0xff]
  %v34 = vld [vmem:[%s0 + $0xa0] sm:$0xff]
  %v35 = vld [vmem:[%s0 + $0xa8] sm:$0xff]
  %v36 = vld [vmem:[%s0 + $0xb0] sm:$0xff]
  %v37 = vld [vmem:[%s0 + $0xb8] sm:$0xff]
  %v38 = vld [vmem:[%s0 + $0xc0] sm:$0xff]
  %v39 = vld [vmem:[%s0 + $0xc8] sm:$0xff]
  %v40 = vld [vmem:[%s0 + $0xd0] sm:$0xff]
  %v41 = vld [vmem:[%s0 + $0xd8] sm:$0xff]
  %v42 = vld [vmem:[%s0 + $0xe0] sm:$0xff]
  %v43 = vld [vmem:[%s0 + $0xe8] sm:$0xff]
  %v44 = vld [vmem:[%s0 + $0xf0] sm:$0xff]
  %v45 = vld [vmem:[%s0 + $0xf8] sm:$0xff]
  %62 = vrot.lane.b32.xlu0 %v16, 4
  %v63 = vpop.permute.xlu0 %62
  %64 = vrot.lane.b32.xlu0 %v17, 4
  %v65 = vpop.permute.xlu0 %64
  %66 = vrot.lane.b32.xlu0 %v20, 4
  %v67 = vpop.permute.xlu0 %66
  %68 = vrot.lane.b32.xlu0 %v21, 4
  %v69 = vpop.permute.xlu0 %68
  %70 = vrot.lane.b32.xlu0 %v24, 4
  %v71 = vpop.permute.xlu0 %70
  %72 = vrot.lane.b32.xlu0 %v25, 4
  %v73 = vpop.permute.xlu0 %72
  %74 = vrot.lane.b32.xlu0 %v28, 4
  %v75 = vpop.permute.xlu0 %74
  %76 = vrot.lane.b32.xlu0 %v29, 4
  %v77 = vpop.permute.xlu0 %76
  %78 = vrot.lane.b32.xlu0 %v32, 4
  %v79 = vpop.permute.xlu0 %78
  %80 = vrot.lane.b32.xlu0 %v33, 4
  %v81 = vpop.permute.xlu0 %80
  %82 = vrot.lane.b32.xlu0 %v36, 4
  %v83 = vpop.permute.xlu0 %82
  %84 = vrot.lane.b32.xlu0 %v37, 4
  %v85 = vpop.permute.xlu0 %84
  %86 = vrot.lane.b32.xlu0 %v40, 4
  %v87 = vpop.permute.xlu0 %86
  %88 = vrot.lane.b32.xlu0 %v41, 4
  %v89 = vpop.permute.xlu0 %88
  %90 = vrot.lane.b32.xlu0 %v44, 4
  %v91 = vpop.permute.xlu0 %90
  %92 = vrot.lane.b32.xlu0 %v45, 4
  %v93 = vpop.permute.xlu0 %92
  %vm110 = vcmask 31744
  %v111 = vsel %vm110, %v14, %v63
  %v112 = vsel %vm110, %v15, %v65
  %v113 = vsel %vm110, %v18, %v67
  %v114 = vsel %vm110, %v19, %v69
  %v115 = vsel %vm110, %v22, %v71
  %v116 = vsel %vm110, %v23, %v73
  %v117 = vsel %vm110, %v26, %v75
  %v118 = vsel %vm110, %v27, %v77
  %v119 = vsel %vm110, %v30, %v79
  %v120 = vsel %vm110, %v31, %v81
  %v121 = vsel %vm110, %v34, %v83
  %v122 = vsel %vm110, %v35, %v85
  %v123 = vsel %vm110, %v38, %v87
  %v124 = vsel %vm110, %v39, %v89
  %v125 = vsel %vm110, %v42, %v91
  %v126 = vsel %vm110, %v43, %v93
  %vm127 = vcmask 64512
  %v128 = vsel %vm127, %v111, 0.0
  %129 = vadd.xlane.f32.xlu0 %v128
  %v130 = vpop.xlane.xlu0 %129
  %v131 = vsel %vm127, %v112, 0.0
  %132 = vadd.xlane.f32.xlu0 %v131
  %v133 = vpop.xlane.xlu0 %132
  %v134 = vsel %vm127, %v113, 0.0
  %135 = vadd.xlane.f32.xlu0 %v134
  %v136 = vpop.xlane.xlu0 %135
  %v137 = vsel %vm127, %v114, 0.0
  %138 = vadd.xlane.f32.xlu0 %v137
  %v139 = vpop.xlane.xlu0 %138
  %v140 = vsel %vm127, %v115, 0.0
  %141 = vadd.xlane.f32.xlu0 %v140
  %v142 = vpop.xlane.xlu0 %141
  %v143 = vsel %vm127, %v116, 0.0
  %144 = vadd.xlane.f32.xlu0 %v143
  %v145 = vpop.xlane.xlu0 %144
  %v146 = vsel %vm127, %v117, 0.0
  %147 = vadd.xlane.f32.xlu0 %v146
  %v148 = vpop.xlane.xlu0 %147
  %v149 = vsel %vm127, %v118, 0.0
  %150 = vadd.xlane.f32.xlu0 %v149
  %v151 = vpop.xlane.xlu0 %150
  %v152 = vsel %vm127, %v119, 0.0
  %153 = vadd.xlane.f32.xlu0 %v152
  %v154 = vpop.xlane.xlu0 %153
  %v155 = vsel %vm127, %v120, 0.0
  %156 = vadd.xlane.f32.xlu0 %v155
  %v157 = vpop.xlane.xlu0 %156
  %v158 = vsel %vm127, %v121, 0.0
  %159 = vadd.xlane.f32.xlu0 %v158
  %v160 = vpop.xlane.xlu0 %159
  %v161 = vsel %vm127, %v122, 0.0
  %162 = vadd.xlane.f32.xlu0 %v161
  %v163 = vpop.xlane.xlu0 %162
  %v164 = vsel %vm127, %v123, 0.0
  %165 = vadd.xlane.f32.xlu0 %v164
  %v166 = vpop.xlane.xlu0 %165
  %v167 = vsel %vm127, %v124, 0.0
  %168 = vadd.xlane.f32.xlu0 %v167
  %v169 = vpop.xlane.xlu0 %168
  %v170 = vsel %vm127, %v125, 0.0
  %171 = vadd.xlane.f32.xlu0 %v170
  %v172 = vpop.xlane.xlu0 %171
  %v173 = vsel %vm127, %v126, 0.0
  %174 = vadd.xlane.f32.xlu0 %v173
  %v175 = vpop.xlane.xlu0 %174
  %v176 = vrcp.pop 8.0
  %v177 = vmul.f32 %v130, %v176
  %v178 = vmul.f32 %v133, %v176
  %v179 = vmul.f32 %v136, %v176
  %v180 = vmul.f32 %v139, %v176
  %v181 = vmul.f32 %v142, %v176
  %v182 = vmul.f32 %v145, %v176
  %v183 = vmul.f32 %v148, %v176
  %v184 = vmul.f32 %v151, %v176
  %v185 = vmul.f32 %v154, %v176
  %v186 = vmul.f32 %v157, %v176
  %v187 = vmul.f32 %v160, %v176
  %v188 = vmul.f32 %v163, %v176
  %v189 = vmul.f32 %v166, %v176
  %v190 = vmul.f32 %v169, %v176
  %v191 = vmul.f32 %v172, %v176
  %v192 = vmul.f32 %v175, %v176
  %v193 = vsub.f32 %v111, %v177
  %v194 = vsub.f32 %v112, %v178
  %v195 = vsub.f32 %v113, %v179
  %v196 = vsub.f32 %v114, %v180
  %v197 = vsub.f32 %v115, %v181
  %v198 = vsub.f32 %v116, %v182
  %v199 = vsub.f32 %v117, %v183
  %v200 = vsub.f32 %v118, %v184
  %v201 = vsub.f32 %v119, %v185
  %v202 = vsub.f32 %v120, %v186
  %v203 = vsub.f32 %v121, %v187
  %v204 = vsub.f32 %v122, %v188
  %v205 = vsub.f32 %v123, %v189
  %v206 = vsub.f32 %v124, %v190
  %v207 = vsub.f32 %v125, %v191
  %v208 = vsub.f32 %v126, %v192
  %v209 = vmul.f32 %v193, %v193
  %v210 = vmul.f32 %v194, %v194
  %v211 = vmul.f32 %v195, %v195
  %v212 = vmul.f32 %v196, %v196
  %v213 = vmul.f32 %v197, %v197
  %v214 = vmul.f32 %v198, %v198
  %v215 = vmul.f32 %v199, %v199
  %v216 = vmul.f32 %v200, %v200
  %v217 = vmul.f32 %v201, %v201
  %v218 = vmul.f32 %v202, %v202
  %v219 = vmul.f32 %v203, %v203
  %v220 = vmul.f32 %v204, %v204
  %v221 = vmul.f32 %v205, %v205
  %v222 = vmul.f32 %v206, %v206
  %v223 = vmul.f32 %v207, %v207
  %v224 = vmul.f32 %v208, %v208
  %v225 = vsel %vm127, %v209, 0.0
  %226 = vadd.xlane.f32.xlu0 %v225
  %v227 = vpop.xlane.xlu0 %226
  %v228 = vsel %vm127, %v210, 0.0
  %229 = vadd.xlane.f32.xlu0 %v228
  %v230 = vpop.xlane.xlu0 %229
  %v231 = vsel %vm127, %v211, 0.0
  %232 = vadd.xlane.f32.xlu0 %v231
  %v233 = vpop.xlane.xlu0 %232
  %v234 = vsel %vm127, %v212, 0.0
  %235 = vadd.xlane.f32.xlu0 %v234
  %v236 = vpop.xlane.xlu0 %235
  %v237 = vsel %vm127, %v213, 0.0
  %238 = vadd.xlane.f32.xlu0 %v237
  %v239 = vpop.xlane.xlu0 %238
  %v240 = vsel %vm127, %v214, 0.0
  %241 = vadd.xlane.f32.xlu0 %v240
  %v242 = vpop.xlane.xlu0 %241
  %v243 = vsel %vm127, %v215, 0.0
  %244 = vadd.xlane.f32.xlu0 %v243
  %v245 = vpop.xlane.xlu0 %244
  %v246 = vsel %vm127, %v216, 0.0
  %247 = vadd.xlane.f32.xlu0 %v246
  %v248 = vpop.xlane.xlu0 %247
  %v249 = vsel %vm127, %v217, 0.0
  %250 = vadd.xlane.f32.xlu0 %v249
  %v251 = vpop.xlane.xlu0 %250
  %v252 = vsel %vm127, %v218, 0.0
  %253 = vadd.xlane.f32.xlu0 %v252
  %v254 = vpop.xlane.xlu0 %253
  %v255 = vsel %vm127, %v219, 0.0
  %256 = vadd.xlane.f32.xlu0 %v255
  %v257 = vpop.xlane.xlu0 %256
  %v258 = vsel %vm127, %v220, 0.0
  %259 = vadd.xlane.f32.xlu0 %v258
  %v260 = vpop.xlane.xlu0 %259
  %v261 = vsel %vm127, %v221, 0.0
  %262 = vadd.xlane.f32.xlu0 %v261
  %v263 = vpop.xlane.xlu0 %262
  %v264 = vsel %vm127, %v222, 0.0
  %265 = vadd.xlane.f32.xlu0 %v264
  %v266 = vpop.xlane.xlu0 %265
  %v267 = vsel %vm127, %v223, 0.0
  %268 = vadd.xlane.f32.xlu0 %v267
  %v269 = vpop.xlane.xlu0 %268
  %v270 = vsel %vm127, %v224, 0.0
  %271 = vadd.xlane.f32.xlu0 %v270
  %v272 = vpop.xlane.xlu0 %271
  %v273 = vmul.f32 %v227, %v176
  %v274 = vmul.f32 %v230, %v176
  %v275 = vmul.f32 %v233, %v176
  %v276 = vmul.f32 %v236, %v176
  %v277 = vmul.f32 %v239, %v176
  %v278 = vmul.f32 %v242, %v176
  %v279 = vmul.f32 %v245, %v176
  %v280 = vmul.f32 %v248, %v176
  %v281 = vmul.f32 %v251, %v176
  %v282 = vmul.f32 %v254, %v176
  %v283 = vmul.f32 %v257, %v176
  %v284 = vmul.f32 %v260, %v176
  %v285 = vmul.f32 %v263, %v176
  %v286 = vmul.f32 %v266, %v176
  %v287 = vmul.f32 %v269, %v176
  %v288 = vmul.f32 %v272, %v176
  %v289 = vadd.f32 %v273, 1e-05
  %v290 = vadd.f32 %v274, 1e-05
  %v291 = vadd.f32 %v275, 1e-05
  %v292 = vadd.f32 %v276, 1e-05
  %v293 = vadd.f32 %v277, 1e-05
  %v294 = vadd.f32 %v278, 1e-05
  %v295 = vadd.f32 %v279, 1e-05
  %v296 = vadd.f32 %v280, 1e-05
  %v297 = vadd.f32 %v281, 1e-05
  %v298 = vadd.f32 %v282, 1e-05
  %v299 = vadd.f32 %v283, 1e-05
  %v300 = vadd.f32 %v284, 1e-05
  %v301 = vadd.f32 %v285, 1e-05
  %v302 = vadd.f32 %v286, 1e-05
  %v303 = vadd.f32 %v287, 1e-05
  %v304 = vadd.f32 %v288, 1e-05
  %v305 = vrsqrt.pop %v289
  %v306 = vrsqrt.pop %v290
  %v307 = vrsqrt.pop %v291
  %v308 = vrsqrt.pop %v292
  %v309 = vrsqrt.pop %v293
  %v310 = vrsqrt.pop %v294
  %v311 = vrsqrt.pop %v295
  %v312 = vrsqrt.pop %v296
  %v313 = vrsqrt.pop %v297
  %v314 = vrsqrt.pop %v298
  %v315 = vrsqrt.pop %v299
  %v316 = vrsqrt.pop %v300
  %v317 = vrsqrt.pop %v301
  %v318 = vrsqrt.pop %v302
  %v319 = vrsqrt.pop %v303
  %v320 = vrsqrt.pop %v304
  %v321 = vmul.f32 %v193, %v305
  %v322 = vmul.f32 %v194, %v306
  %v323 = vmul.f32 %v195, %v307
  %v324 = vmul.f32 %v196, %v308
  %v325 = vmul.f32 %v197, %v309
  %v326 = vmul.f32 %v198, %v310
  %v327 = vmul.f32 %v199, %v311
  %v328 = vmul.f32 %v200, %v312
  %v329 = vmul.f32 %v201, %v313
  %v330 = vmul.f32 %v202, %v314
  %v331 = vmul.f32 %v203, %v315
  %v332 = vmul.f32 %v204, %v316
  %v333 = vmul.f32 %v205, %v317
  %v334 = vmul.f32 %v206, %v318
  %v335 = vmul.f32 %v207, %v319
  %v336 = vmul.f32 %v208, %v320
  %v337 = vld [vmem:[%s1] sm:$0xff]
  %v338 = vld [vmem:[%s2] sm:$0x1]
  %v340 = vlaneseq
  %v341 = vshrl.u32 %v340, 7
  %v342 = vsub.s32 0, %v341
  %v343 = vrot.slane %v338, %v342
  %v346 = vsel %vm127, %v321, 0
  %v349 = vsel %vm127, %v322, 0
  %v352 = vsel %vm127, %v323, 0
  %v355 = vsel %vm127, %v324, 0
  %v358 = vsel %vm127, %v325, 0
  %v361 = vsel %vm127, %v326, 0
  %v364 = vsel %vm127, %v327, 0
  %v367 = vsel %vm127, %v328, 0
  %v370 = vsel %vm127, %v329, 0
  %v373 = vsel %vm127, %v330, 0
  %v376 = vsel %vm127, %v331, 0
  %v379 = vsel %vm127, %v332, 0
  %v382 = vsel %vm127, %v333, 0
  %v385 = vsel %vm127, %v334, 0
  %v388 = vsel %vm127, %v335, 0
  %v391 = vsel %vm127, %v336, 0
  %393 = vmatprep.subr.mxu0 0.0
  %394 = vmatpush1.msra.mxu0 %v337
  %395 = vmatprep.subr.mxu0 0.0
  %396 = vmatpush1.msra.mxu0 0.0
  %397 = vmatprep.subr.mxu0 0.0
  %398 = vmatpush1.msra.mxu0 0.0
  %399 = vmatprep.subr.mxu0 0.0
  %400 = vmatpush1.msra.mxu0 0.0
  %401 = vmatprep.subr.mxu0 0.0
  %402 = vmatpush1.msra.mxu0 0.0
  %403 = vmatprep.subr.mxu0 0.0
  %404 = vmatpush1.msra.mxu0 0.0
  %405 = vmatprep.subr.mxu0 0.0
  %406 = vmatpush1.msra.mxu0 0.0
  %407 = vmatprep.subr.mxu0 0.0
  %408 = vmatpush1.msra.mxu0 0.0
  %409 = vmatprep.subr.mxu0 0.0
  %410 = vmatpush1.msra.mxu0 0.0
  %411 = vmatprep.subr.mxu0 0.0
  %412 = vmatpush1.msra.mxu0 0.0
  %413 = vmatprep.subr.mxu0 0.0
  %414 = vmatpush1.msra.mxu0 0.0
  %415 = vmatprep.subr.mxu0 0.0
  %416 = vmatpush1.msra.mxu0 0.0
  %417 = vmatprep.subr.mxu0 0.0
  %418 = vmatpush1.msra.mxu0 0.0
  %419 = vmatprep.subr.mxu0 0.0
  %420 = vmatpush1.msra.mxu0 0.0
  %421 = vmatprep.subr.mxu0 0.0
  %422 = vmatpush1.msra.mxu0 0.0
  %423 = vmatprep.subr.mxu0 0.0
  %424 = vmatpush1.msra.mxu0 0.0
  %425 = vmatprep.subr.mxu0 0.0
  %426 = vmatpush1.msra.mxu0 0.0
  %427 = vmatprep.subr.mxu0 0.0
  %428 = vmatpush1.msra.mxu0 0.0
  %429 = vmatprep.subr.mxu0 0.0
  %430 = vmatpush1.msra.mxu0 0.0
  %431 = vmatprep.subr.mxu0 0.0
  %432 = vmatpush1.msra.mxu0 0.0
  %433 = vmatprep.subr.mxu0 0.0
  %434 = vmatpush1.msra.mxu0 0.0
  %435 = vmatprep.subr.mxu0 0.0
  %436 = vmatpush1.msra.mxu0 0.0
  %437 = vmatprep.subr.mxu0 0.0
  %438 = vmatpush1.msra.mxu0 0.0
  %439 = vmatprep.subr.mxu0 0.0
  %440 = vmatpush1.msra.mxu0 0.0
  %441 = vmatprep.subr.mxu0 0.0
  %442 = vmatpush1.msra.mxu0 0.0
  %443 = vmatprep.subr.mxu0 0.0
  %444 = vmatpush1.msra.mxu0 0.0
  %445 = vmatprep.subr.mxu0 0.0
  %446 = vmatpush1.msra.mxu0 0.0
  %447 = vmatprep.subr.mxu0 0.0
  %448 = vmatpush1.msra.mxu0 0.0
  %449 = vmatprep.subr.mxu0 0.0
  %450 = vmatpush1.msra.mxu0 0.0
  %451 = vmatprep.subr.mxu0 0.0
  %452 = vmatpush1.msra.mxu0 0.0
  %453 = vmatprep.subr.mxu0 0.0
  %454 = vmatpush1.msra.mxu0 0.0
  %455 = vmatprep.subr.mxu0 0.0
  %456 = vmatpush1.msra.mxu0 0.0
  %457 = vmatprep.mubr.f32.mxu0 0.0
  %458 = vmatmul.mubr.f32.gmra.mrb[0].mxu0 %v346
  %v459 = vpop.f32.mrb[0].mxu0
  %v460 = vadd.f32 %v343, %v459
  %v461 = vpop.f32.mrb[0].mxu0
  %462 = vmatprep.mubr.f32.mxu0 0.0
  %463 = vmatmul.mubr.f32.gmra.mrb[0].mxu0 %v349
  %v464 = vpop.f32.mrb[0].mxu0
  %v465 = vadd.f32 %v343, %v464
  %v466 = vpop.f32.mrb[0].mxu0
  %467 = vmatprep.mubr.f32.mxu0 0.0
  %468 = vmatmul.mubr.f32.gmra.mrb[0].mxu0 %v352
  %v469 = vpop.f32.mrb[0].mxu0
  %v470 = vadd.f32 %v343, %v469
  %v471 = vpop.f32.mrb[0].mxu0
  %472 = vmatprep.mubr.f32.mxu0 0.0
  %473 = vmatmul.mubr.f32.gmra.mrb[0].mxu0 %v355
  %v474 = vpop.f32.mrb[0].mxu0
  %v475 = vadd.f32 %v343, %v474
  %v476 = vpop.f32.mrb[0].mxu0
  %477 = vmatprep.mubr.f32.mxu0 0.0
  %478 = vmatmul.mubr.f32.gmra.mrb[0].mxu0 %v358
  %v479 = vpop.f32.mrb[0].mxu0
  %v480 = vadd.f32 %v343, %v479
  %v481 = vpop.f32.mrb[0].mxu0
  %482 = vmatprep.mubr.f32.mxu0 0.0
  %483 = vmatmul.mubr.f32.gmra.mrb[0].mxu0 %v361
  %v484 = vpop.f32.mrb[0].mxu0
  %v485 = vadd.f32 %v343, %v484
  %v486 = vpop.f32.mrb[0].mxu0
  %487 = vmatprep.mubr.f32.mxu0 0.0
  %488 = vmatmul.mubr.f32.gmra.mrb[0].mxu0 %v364
  %v489 = vpop.f32.mrb[0].mxu0
  %v490 = vadd.f32 %v343, %v489
  %v491 = vpop.f32.mrb[0].mxu0
  %492 = vmatprep.mubr.f32.mxu0 0.0
  %493 = vmatmul.mubr.f32.gmra.mrb[0].mxu0 %v367
  %v494 = vpop.f32.mrb[0].mxu0
  %v495 = vadd.f32 %v343, %v494
  %v496 = vpop.f32.mrb[0].mxu0
  %497 = vmatprep.mubr.f32.mxu0 0.0
  %498 = vmatmul.mubr.f32.gmra.mrb[0].mxu0 %v370
  %v499 = vpop.f32.mrb[0].mxu0
  %v500 = vadd.f32 %v343, %v499
  %v501 = vpop.f32.mrb[0].mxu0
  %502 = vmatprep.mubr.f32.mxu0 0.0
  %503 = vmatmul.mubr.f32.gmra.mrb[0].mxu0 %v373
  %v504 = vpop.f32.mrb[0].mxu0
  %v505 = vadd.f32 %v343, %v504
  %v506 = vpop.f32.mrb[0].mxu0
  %507 = vmatprep.mubr.f32.mxu0 0.0
  %508 = vmatmul.mubr.f32.gmra.mrb[0].mxu0 %v376
  %v509 = vpop.f32.mrb[0].mxu0
  %v510 = vadd.f32 %v343, %v509
  %v511 = vpop.f32.mrb[0].mxu0
  %512 = vmatprep.mubr.f32.mxu0 0.0
  %513 = vmatmul.mubr.f32.gmra.mrb[0].mxu0 %v379
  %v514 = vpop.f32.mrb[0].mxu0
  %v515 = vadd.f32 %v343, %v514
  %v516 = vpop.f32.mrb[0].mxu0
  %517 = vmatprep.mubr.f32.mxu0 0.0
  %518 = vmatmul.mubr.f32.gmra.mrb[0].mxu0 %v382
  %v519 = vpop.f32.mrb[0].mxu0
  %v520 = vadd.f32 %v343, %v519
  %v521 = vpop.f32.mrb[0].mxu0
  %522 = vmatprep.mubr.f32.mxu0 0.0
  %523 = vmatmul.mubr.f32.gmra.mrb[0].mxu0 %v385
  %v524 = vpop.f32.mrb[0].mxu0
  %v525 = vadd.f32 %v343, %v524
  %v526 = vpop.f32.mrb[0].mxu0
  %527 = vmatprep.mubr.f32.mxu0 0.0
  %528 = vmatmul.mubr.f32.gmra.mrb[0].mxu0 %v388
  %v529 = vpop.f32.mrb[0].mxu0
  %v530 = vadd.f32 %v343, %v529
  %v531 = vpop.f32.mrb[0].mxu0
  %532 = vmatprep.mubr.f32.mxu0 0.0
  %533 = vmatmul.mubr.f32.gmra.mrb[0].mxu0 %v391
  %v534 = vpop.f32.mrb[0].mxu0
  %v535 = vadd.f32 %v343, %v534
  %v536 = vpop.f32.mrb[0].mxu0
  %537 = vdwg.mxu0
  %538 = vst.msk [vmem:[%s3] sm:$0xff] %vm127, %v460
  %539 = vst.msk [vmem:[%s3 + $0x8] sm:$0xff] %vm127, %v465
  %540 = vst.msk [vmem:[%s3 + $0x10] sm:$0xff] %vm127, %v470
  %541 = vst.msk [vmem:[%s3 + $0x18] sm:$0xff] %vm127, %v475
  %542 = vst.msk [vmem:[%s3 + $0x20] sm:$0xff] %vm127, %v480
  %543 = vst.msk [vmem:[%s3 + $0x28] sm:$0xff] %vm127, %v485
  %544 = vst.msk [vmem:[%s3 + $0x30] sm:$0xff] %vm127, %v490
  %545 = vst.msk [vmem:[%s3 + $0x38] sm:$0xff] %vm127, %v495
  %546 = vst.msk [vmem:[%s3 + $0x40] sm:$0xff] %vm127, %v500
  %547 = vst.msk [vmem:[%s3 + $0x48] sm:$0xff] %vm127, %v505
  %548 = vst.msk [vmem:[%s3 + $0x50] sm:$0xff] %vm127, %v510
  %549 = vst.msk [vmem:[%s3 + $0x58] sm:$0xff] %vm127, %v515
  %550 = vst.msk [vmem:[%s3 + $0x60] sm:$0xff] %vm127, %v520
  %551 = vst.msk [vmem:[%s3 + $0x68] sm:$0xff] %vm127, %v525
  %552 = vst.msk [vmem:[%s3 + $0x70] sm:$0xff] %vm127, %v530
  %553 = vst.msk [vmem:[%s3 + $0x78] sm:$0xff] %vm127, %v535
  // Predicated region
  $region14: #{tpu_custom_call.1} parent=0 // pred_check
    _
  $region15: #{tpu_custom_call.1} parent=0 // pred_check_branch
    %555 = sbr.rel (0) target = $region17
  $region16: #{tpu_custom_call.1} parent=0 // pred_region
    _
  $region17: #{tpu_custom_call.1} parent=0 // pred_fallthru
    _
  // Predicated region
  $region18: #{tpu_custom_call.1} parent=0 // pred_check
    _
  $region19: #{tpu_custom_call.1} parent=0 // pred_check_branch
    %557 = sbr.rel (0) target = $region21
  $region20: #{tpu_custom_call.1} parent=0 // pred_region
    _
  $region21: #{tpu_custom_call.1} parent=0 // pred_fallthru
    _

</llo_original>
